<compile_context>
chip_gen: v6e
topology: v6e:2x2x1
jax: 0.10.0
libtpu: 0.0.40
codegen_flags: <defaults>
</compile_context>

<pallas_src>
import functools

import jax
import jax.numpy as jnp
from jax.experimental import pallas as pl
from jax.experimental.pallas import tpu as pltpu

LANES = 128
CHUNK_SUPER_ROWS = 8                      # super-rows per in-kernel fori step
TILE_BYTES_PER_INPUT = 4 * 1024 * 1024    # ~4 MiB HBM tile per input per step


def _native_sublanes(dtype):
    """Dtype-native sublane count: 8 (4-byte), 16 (2-byte), 32 (1-byte)."""
    return max(8, 32 // jnp.dtype(dtype).itemsize)


def _num_tensorcores():
    """TensorCores per device (perf heuristic only; never affects results)."""
    try:
        kind = jax.devices()[0].device_kind.lower()
    except Exception:
        return 1
    # v3/v4 megacore and v7x expose 2 TensorCores per device; v5e/v6e have 1.
    return 2 if any(tag in kind for tag in ("v3", "v4", "v7")) else 1


def _masked_smooth_l1_kernel(pred_ref, target_ref, out_ref, *,
                             total_super_rows, tile_super_rows,
                             chunk_super_rows, num_blocks, steps_per_part,
                             sublanes):
    i = pl.program_id(0)          # partition ("parallel") index
    j = pl.program_id(1)          # reduction step within the partition

    @pl.when(j == 0)
    def _init():
        out_ref[...] = jnp.zeros_like(out_ref)

    # Un-clamped global block index; only used for edge/duplicate masking.
    block_idx = i * steps_per_part + j
    row_start = block_idx * tile_super_rows

    num_full_chunks = tile_super_rows // chunk_super_rows
    leftover = tile_super_rows - num_full_chunks * chunk_super_rows

    def accumulate(offset, nrows, masked):
        # Per-chunk compute: the whole elementwise chain stays in vregs.
        p = pred_ref[pl.ds(offset, nrows)].astype(jnp.float32)
        t = target_ref[pl.ds(offset, nrows)].astype(jnp.float32)
        valid = t != 0.0
        if masked:
            rid = (row_start + offset) + jax.lax.broadcasted_iota(
                jnp.int32, (nrows, sublanes, LANES), 0)
            valid = valid & (rid < total_super_rows)
        diff = jnp.where(valid, p - t, 0.0)      # also squashes OOB garbage
        ad = jnp.abs(diff)
        loss = jnp.where(ad < 1.0, 0.5 * diff * diff, ad - 0.5)
        # VPU-only partial sums into the (1, sublanes, 128) output block;
        # the cross-lane/sublane reduce happens once in the wrapper.
        out_ref[...] += jnp.sum(loss, axis=0, keepdims=True)

    def run(masked):
        def body(c, carry):
            off = pl.multiple_of(c * chunk_super_rows, chunk_super_rows)
            accumulate(off, chunk_super_rows, masked)
            return carry
        jax.lax.fori_loop(0, num_full_chunks, body, None)
        if leftover:
            accumulate(num_full_chunks * chunk_super_rows, leftover, masked)

    # Interior blocks are always fully valid: no iota / row-index mask needed.
    @pl.when(block_idx < num_blocks - 1)
    def _interior():
        run(masked=False)

    # The (possibly partial) last block and any clamped duplicate blocks from
    # the partition split take the row-masked path (duplicates contribute 0).
    @pl.when(block_idx >= num_blocks - 1)
    def _edge():
        run(masked=True)


def _smooth_l1_masked_sum_jnp(pred, target):
    """Plain-jnp masked smooth-L1 SUM for the tiny ragged tail."""
    p = pred.astype(jnp.float32)
    t = target.astype(jnp.float32)
    diff = jnp.where(t != 0.0, p - t, 0.0)
    ad = jnp.abs(diff)
    return jnp.sum(jnp.where(ad < 1.0, 0.5 * diff * diff, ad - 0.5))


def masked_smooth_l1_loss(pred, target, *, tile_super_rows=None,
                          num_partitions=None):
    """Masked smooth-L1 (beta=1) loss, mean over ALL elements. Returns f32."""
    assert pred.shape == target.shape
    n_elems = pred.size
    if n_elems == 0:
        return jnp.float32(jnp.nan)   # torch.mean over an empty tensor

    sublanes = max(_native_sublanes(pred.dtype), _native_sublanes(target.dtype))
    super_elems = sublanes * LANES

    p_flat = pred.reshape(-1)
    t_flat = target.reshape(-1)

    total_super_rows = n_elems // super_elems
    n_main = total_super_rows * super_elems

    # Sub-super-row tail (< sublanes*128 elements): plain jnp. Avoids a
    # full-array jnp.pad copy on ragged element counts.
    tail_sum = jnp.float32(0.0)
    if n_main < n_elems:
        tail_sum = _smooth_l1_masked_sum_jnp(p_flat[n_main:], t_flat[n_main:])

    if total_super_rows == 0:
        return (tail_sum / jnp.float32(n_elems)).astype(jnp.float32)

    if n_main < n_elems:
        p_flat = p_flat[:n_main]
        t_flat = t_flat[:n_main]
    p3 = p_flat.reshape(total_super_rows, sublanes, LANES)
    t3 = t_flat.reshape(total_super_rows, sublanes, LANES)

    # Tile size: large lane/sublane-aligned slabs (~4 MiB per input per step)
    # so the ~0.35 us per-grid-step fixed overhead stays well under DMA time.
    max_item = max(pred.dtype.itemsize, target.dtype.itemsize)
    if tile_super_rows is None:
        tile_super_rows = max(1, TILE_BYTES_PER_INPUT // (super_elems * max_item))
    tile_super_rows = min(int(tile_super_rows), total_super_rows)
    chunk_super_rows = min(CHUNK_SUPER_ROWS, tile_super_rows)

    num_blocks = pl.cdiv(total_super_rows, tile_super_rows)
    if num_partitions is None:
        num_partitions = _num_tensorcores()
    n_parts = max(1, min(int(num_partitions), num_blocks))
    steps_per_part = pl.cdiv(num_blocks, n_parts)

    def in_index_map(i, j):
        # Clamp so duplicated / overhanging (i, j) slots stay in range; the
        # kernel's row-index mask zeroes their contribution.
        return (jnp.minimum(i * steps_per_part + j, num_blocks - 1), 0, 0)

    kernel = functools.partial(
        _masked_smooth_l1_kernel,
        total_super_rows=total_super_rows,
        tile_super_rows=tile_super_rows,
        chunk_super_rows=chunk_super_rows,
        num_blocks=num_blocks,
        steps_per_part=steps_per_part,
        sublanes=sublanes,
    )

    in_bytes = n_main * (pred.dtype.itemsize + target.dtype.itemsize)
    cost = pl.CostEstimate(flops=6 * n_main, transcendentals=0,
                           bytes_accessed=in_bytes + n_parts * super_elems * 4)

    # Double-buffered inputs (2 buffers x both inputs' tiles) + slack.
    tile_in_bytes = tile_super_rows * super_elems * (
        pred.dtype.itemsize + target.dtype.itemsize)
    vmem_limit = int(min(48 << 20, max(24 << 20, 2 * tile_in_bytes + (8 << 20))))

    partials = pl.pallas_call(
        kernel,
        out_shape=jax.ShapeDtypeStruct((n_parts, sublanes, LANES), jnp.float32),
        grid_spec=pltpu.PrefetchScalarGridSpec(
            num_scalar_prefetch=0,
            grid=(n_parts, steps_per_part),
            in_specs=[
                pl.BlockSpec((tile_super_rows, sublanes, LANES), in_index_map),
                pl.BlockSpec((tile_super_rows, sublanes, LANES), in_index_map),
            ],
            # Lane-dense per-partition accumulator lives in the output block
            # (same block for every j step); final reduce done in the wrapper.
            out_specs=pl.BlockSpec((1, sublanes, LANES), lambda i, j: (i, 0, 0)),
        ),
        compiler_params=pltpu.CompilerParams(
            # TODO(synk): on v7x confirm "parallel" shards the leading axis over
            # both TensorCores; switch to pltpu.CORE_PARALLEL if it does not.
            dimension_semantics=("parallel", "arbitrary"),
            vmem_limit_bytes=vmem_limit),
        cost_estimate=cost,
    )(p3, t3)

    total = jnp.sum(partials) + tail_sum
    # Mean over the ORIGINAL element count (masked / duplicated rows add 0).
    return (total / jnp.float32(n_elems)).astype(jnp.float32)


def _reference(pred, target):
    pred = pred.astype(jnp.float32)
    target = target.astype(jnp.float32)
    mask = (target != 0.0).astype(jnp.float32)
    diff = pred * mask - target * mask
    ad = jnp.abs(diff)
    loss = jnp.where(ad < 1.0, 0.5 * diff * diff, ad - 0.5)
    return jnp.mean(loss)


def _make_inputs(key, shape, drop_p=0.3, dtype=jnp.float32):
    k1, k2, k3 = jax.random.split(key, 3)
    pred = jax.random.normal(k1, shape, dtype=jnp.float32) * 2.0
    target = jax.random.normal(k2, shape, dtype=jnp.float32) * 2.0
    drop = jax.random.bernoulli(k3, p=drop_p, shape=shape)
    target = jnp.where(drop, 0.0, target)
    return pred.astype(dtype), target.astype(dtype)


if __name__ == "__main__":
    key = jax.random.PRNGKey(0)
    k1, k2, k3, k4 = jax.random.split(key, 4)

    # Primary test: NCHW shape consistent with the module.
    pred, target = _make_inputs(k1, (2, 4, 16, 16))
    out = jax.block_until_ready(masked_smooth_l1_loss(pred, target))
    ref = jax.block_until_ready(_reference(pred, target))
    assert jnp.allclose(out, ref, rtol=1e-4, atol=1e-6), (out, ref)

    # Ragged element count: exercises kernel + sub-super-row jnp tail.
    pred, target = _make_inputs(k2, (2, 5, 13, 17))
    out = jax.block_until_ready(masked_smooth_l1_loss(pred, target))
    ref = jax.block_until_ready(_reference(pred, target))
    assert jnp.allclose(out, ref, rtol=1e-4, atol=1e-6), (out, ref)

    # Multi-block grid with a partial edge block and a clamped duplicate block:
    # force small tiles and 2 partitions to exercise the masked edge path.
    pred, target = _make_inputs(k3, (2, 8, 36, 128))
    out = jax.block_until_ready(
        masked_smooth_l1_loss(pred, target, tile_super_rows=16,
                              num_partitions=2))
    ref = jax.block_until_ready(_reference(pred, target))
    assert jnp.allclose(out, ref, rtol=1e-4, atol=1e-6), (out, ref)

    # bf16 inputs: exercises dtype-native (16, 128) sublane tiling.
    pred, target = _make_inputs(k4, (2, 4, 32, 32), dtype=jnp.bfloat16)
    out = jax.block_until_ready(masked_smooth_l1_loss(pred, target))
    ref = jax.block_until_ready(_reference(pred, target))
    assert jnp.allclose(out, ref, rtol=1e-3, atol=1e-5), (out, ref)

    print("KERNEL_OK")
</pallas_src>

<mosaic_0001>
module attributes {stable_mosaic.version = 11 : i64} {
  func.func @_masked_smooth_l1_kernel(%arg0: i32, %arg1: i32, %arg2: memref<2x8x128xf32, #tpu.memory_space<vmem>>, %arg3: memref<2x8x128xf32, #tpu.memory_space<vmem>>, %arg4: memref<1x8x128xf32, #tpu.memory_space<vmem>>) attributes {dimension_semantics = [#tpu.dimension_semantics<parallel>, #tpu.dimension_semantics<arbitrary>], iteration_bounds = array<i64: 1, 1>, scalar_prefetch = 0 : i64, scratch_operands = 0 : i64, tpu.core_type = #tpu.core_type<tc>, window_params = [{transform_indices = @transform_0, window_bounds = array<i64: 2, 8, 128>}, {transform_indices = @transform_1, window_bounds = array<i64: 2, 8, 128>}, {transform_indices = @transform_2, window_bounds = array<i64: 1, 8, 128>}]} {
    %c0_i32 = arith.constant 0 : i32
    %0 = arith.cmpi eq, %arg1, %c0_i32 : i32
    %1 = arith.extui %0 : i1 to i32
    %c0_i32_0 = arith.constant 0 : i32
    %2 = arith.cmpi ne, %1, %c0_i32_0 : i32
    scf.if %2 {
      %cst = arith.constant 0.000000e+00 : f32
      %12 = vector.broadcast %cst : f32 to vector<1x8x128xf32>
      %c0 = arith.constant 0 : index
      %c0_5 = arith.constant 0 : index
      %c0_6 = arith.constant 0 : index
      %13 = vector.load %arg4[%c0, %c0_5, %c0_6] : memref<1x8x128xf32, #tpu.memory_space<vmem>>, vector<1x8x128xf32>
      tpu.vector_store %arg4[%c0, %c0_5, %c0_6], %12 {strides = array<i32>} : memref<1x8x128xf32, #tpu.memory_space<vmem>>, vector<1x8x128xf32>,
    } else {
    }
    %c1_i32 = arith.constant 1 : i32
    %3 = arith.muli %arg0, %c1_i32 : i32
    %4 = arith.addi %3, %arg1 : i32
    %c2_i32 = arith.constant 2 : i32
    %5 = arith.muli %4, %c2_i32 : i32
    %c0_i32_1 = arith.constant 0 : i32
    %6 = arith.cmpi slt, %4, %c0_i32_1 : i32
    %7 = arith.extui %6 : i1 to i32
    %c0_i32_2 = arith.constant 0 : i32
    %8 = arith.cmpi ne, %7, %c0_i32_2 : i32
    scf.if %8 {
      %c0_i32_5 = arith.constant 0 : i32
      %c2_i32_6 = arith.constant 2 : i32
      %12 = arith.muli %c0_i32_5, %c2_i32_6 : i32
      %13 = tpu.assume_multiple %12, 2 : i32
      %14 = arith.index_cast %13 : i32 to index
      %c0 = arith.constant 0 : index
      %c0_7 = arith.constant 0 : index
      %15 = vector.load %arg2[%14, %c0, %c0_7] : memref<2x8x128xf32, #tpu.memory_space<vmem>>, vector<2x8x128xf32>
      %16 = arith.index_cast %13 : i32 to index
      %c0_8 = arith.constant 0 : index
      %c0_9 = arith.constant 0 : index
      %17 = vector.load %arg3[%16, %c0_8, %c0_9] : memref<2x8x128xf32, #tpu.memory_space<vmem>>, vector<2x8x128xf32>
      %cst = arith.constant 0.000000e+00 : f32
      %18 = vector.broadcast %cst : f32 to vector<2x8x128xf32>
      %19 = arith.cmpf one, %17, %18 : vector<2x8x128xf32>
      %20 = arith.subf %15, %17 : vector<2x8x128xf32>
      %cst_10 = arith.constant 0.000000e+00 : f32
      %21 = vector.broadcast %cst_10 : f32 to vector<2x8x128xf32>
      %22 = arith.select %19, %20, %21 : vector<2x8x128xi1>, vector<2x8x128xf32>
      %23 = math.absf %22 : vector<2x8x128xf32>
      %cst_11 = arith.constant 1.000000e+00 : f32
      %24 = vector.broadcast %cst_11 : f32 to vector<2x8x128xf32>
      %25 = arith.cmpf olt, %23, %24 : vector<2x8x128xf32>
      %cst_12 = arith.constant 5.000000e-01 : f32
      %26 = vector.broadcast %cst_12 : f32 to vector<2x8x128xf32>
      %27 = arith.mulf %26, %22 : vector<2x8x128xf32>
      %28 = arith.mulf %27, %22 : vector<2x8x128xf32>
      %cst_13 = arith.constant 5.000000e-01 : f32
      %29 = vector.broadcast %cst_13 : f32 to vector<2x8x128xf32>
      %30 = arith.subf %23, %29 : vector<2x8x128xf32>
      %31 = arith.select %25, %28, %30 : vector<2x8x128xi1>, vector<2x8x128xf32>
      %c0_14 = arith.constant 0 : index
      %c0_15 = arith.constant 0 : index
      %c0_16 = arith.constant 0 : index
      %32 = vector.load %arg4[%c0_14, %c0_15, %c0_16] : memref<1x8x128xf32, #tpu.memory_space<vmem>>, vector<1x8x128xf32>
      %cst_17 = arith.constant dense<0.000000e+00> : vector<8x128xf32>
      %33 = vector.multi_reduction <add>, %31, %cst_17 [0] : vector<2x8x128xf32> to vector<8x128xf32>
      %34 = vector.shape_cast %33 : vector<8x128xf32> to vector<1x8x128xf32>
      %35 = arith.addf %32, %34 : vector<1x8x128xf32>
      %c0_18 = arith.constant 0 : index
      %c0_19 = arith.constant 0 : index
      %c0_20 = arith.constant 0 : index
      %36 = vector.load %arg4[%c0_18, %c0_19, %c0_20] : memref<1x8x128xf32, #tpu.memory_space<vmem>>, vector<1x8x128xf32>
      tpu.vector_store %arg4[%c0_18, %c0_19, %c0_20], %35 {strides = array<i32>} : memref<1x8x128xf32, #tpu.memory_space<vmem>>, vector<1x8x128xf32>,
      %c1_i32_21 = arith.constant 1 : i32
    } else {
    }
    %c0_i32_3 = arith.constant 0 : i32
    %9 = arith.cmpi sge, %4, %c0_i32_3 : i32
    %10 = arith.extui %9 : i1 to i32
    %c0_i32_4 = arith.constant 0 : i32
    %11 = arith.cmpi ne, %10, %c0_i32_4 : i32
    scf.if %11 {
      %c0_i32_5 = arith.constant 0 : i32
      %c2_i32_6 = arith.constant 2 : i32
      %12 = arith.muli %c0_i32_5, %c2_i32_6 : i32
      %13 = tpu.assume_multiple %12, 2 : i32
      %14 = arith.index_cast %13 : i32 to index
      %c0 = arith.constant 0 : index
      %c0_7 = arith.constant 0 : index
      %15 = vector.load %arg2[%14, %c0, %c0_7] : memref<2x8x128xf32, #tpu.memory_space<vmem>>, vector<2x8x128xf32>
      %16 = arith.index_cast %13 : i32 to index
      %c0_8 = arith.constant 0 : index
      %c0_9 = arith.constant 0 : index
      %17 = vector.load %arg3[%16, %c0_8, %c0_9] : memref<2x8x128xf32, #tpu.memory_space<vmem>>, vector<2x8x128xf32>
      %cst = arith.constant 0.000000e+00 : f32
      %18 = vector.broadcast %cst : f32 to vector<2x8x128xf32>
      %19 = arith.cmpf one, %17, %18 : vector<2x8x128xf32>
      %20 = arith.addi %5, %13 : i32
      %21 = tpu.iota {dimensions = array<i32: 0>} : vector<2x8x128xi32>
      %22 = vector.broadcast %20 : i32 to vector<2x8x128xi32>
      %23 = arith.addi %22, %21 : vector<2x8x128xi32>
      %c2_i32_10 = arith.constant 2 : i32
      %24 = vector.broadcast %c2_i32_10 : i32 to vector<2x8x128xi32>
      %25 = arith.cmpi slt, %23, %24 : vector<2x8x128xi32>
      %26 = arith.andi %19, %25 : vector<2x8x128xi1>
      %27 = arith.subf %15, %17 : vector<2x8x128xf32>
      %cst_11 = arith.constant 0.000000e+00 : f32
      %28 = vector.broadcast %cst_11 : f32 to vector<2x8x128xf32>
      %29 = arith.select %26, %27, %28 : vector<2x8x128xi1>, vector<2x8x128xf32>
      %30 = math.absf %29 : vector<2x8x128xf32>
      %cst_12 = arith.constant 1.000000e+00 : f32
      %31 = vector.broadcast %cst_12 : f32 to vector<2x8x128xf32>
      %32 = arith.cmpf olt, %30, %31 : vector<2x8x128xf32>
      %cst_13 = arith.constant 5.000000e-01 : f32
      %33 = vector.broadcast %cst_13 : f32 to vector<2x8x128xf32>
      %34 = arith.mulf %33, %29 : vector<2x8x128xf32>
      %35 = arith.mulf %34, %29 : vector<2x8x128xf32>
      %cst_14 = arith.constant 5.000000e-01 : f32
      %36 = vector.broadcast %cst_14 : f32 to vector<2x8x128xf32>
      %37 = arith.subf %30, %36 : vector<2x8x128xf32>
      %38 = arith.select %32, %35, %37 : vector<2x8x128xi1>, vector<2x8x128xf32>
      %c0_15 = arith.constant 0 : index
      %c0_16 = arith.constant 0 : index
      %c0_17 = arith.constant 0 : index
      %39 = vector.load %arg4[%c0_15, %c0_16, %c0_17] : memref<1x8x128xf32, #tpu.memory_space<vmem>>, vector<1x8x128xf32>
      %cst_18 = arith.constant dense<0.000000e+00> : vector<8x128xf32>
      %40 = vector.multi_reduction <add>, %38, %cst_18 [0] : vector<2x8x128xf32> to vector<8x128xf32>
      %41 = vector.shape_cast %40 : vector<8x128xf32> to vector<1x8x128xf32>
      %42 = arith.addf %39, %41 : vector<1x8x128xf32>
      %c0_19 = arith.constant 0 : index
      %c0_20 = arith.constant 0 : index
      %c0_21 = arith.constant 0 : index
      %43 = vector.load %arg4[%c0_19, %c0_20, %c0_21] : memref<1x8x128xf32, #tpu.memory_space<vmem>>, vector<1x8x128xf32>
      tpu.vector_store %arg4[%c0_19, %c0_20, %c0_21], %42 {strides = array<i32>} : memref<1x8x128xf32, #tpu.memory_space<vmem>>, vector<1x8x128xf32>,
      %c1_i32_22 = arith.constant 1 : i32
    } else {
    }
    return
  }
  func.func @transform_0(%arg0: i32, %arg1: i32) -> (i32, i32, i32) {
    %c1_i32 = arith.constant 1 : i32
    %0 = arith.muli %arg0, %c1_i32 : i32
    %1 = arith.addi %0, %arg1 : i32
    %c0_i32 = arith.constant 0 : i32
    %2 = arith.minsi %1, %c0_i32 : i32
    %c0_i32_0 = arith.constant 0 : i32
    %c0_i32_1 = arith.constant 0 : i32
    %c0_i32_2 = arith.constant 0 : i32
    return %2, %c0_i32_0, %c0_i32_1 : i32, i32, i32
  }
  func.func @transform_1(%arg0: i32, %arg1: i32) -> (i32, i32, i32) {
    %c1_i32 = arith.constant 1 : i32
    %0 = arith.muli %arg0, %c1_i32 : i32
    %1 = arith.addi %0, %arg1 : i32
    %c0_i32 = arith.constant 0 : i32
    %2 = arith.minsi %1, %c0_i32 : i32
    %c0_i32_0 = arith.constant 0 : i32
    %c0_i32_1 = arith.constant 0 : i32
    %c0_i32_2 = arith.constant 0 : i32
    return %2, %c0_i32_0, %c0_i32_1 : i32, i32, i32
  }
  func.func @transform_2(%arg0: i32, %arg1: i32) -> (i32, i32, i32) {
    %c0_i32 = arith.constant 0 : i32
    %c0_i32_0 = arith.constant 0 : i32
    %c0_i32_1 = arith.constant 0 : i32
    return %arg0, %c0_i32, %c0_i32_0 : i32, i32, i32
  }
}

</mosaic_0001>

<llo_original>
// kernel: tpu_custom_call.1
$region0: #{tpu_custom_call.1}
  #allocation0 [shape = 'u32[]', space=smem, size = 0x4, offset = 0x4, fixed_abs, tag = 'smem constant byte address 0x4 - core index']
  #allocation1 [shape = 'u32[144,128]{1,0:T(1,128)}', space=vmem, size = 0x12000, scoped, tag = 'internal scratch']
  %s0 = inlined_call_operand.hbm [shape: f32[2,8,128], index: 0, kind: input, shape index: {}]
  %s1 = inlined_call_operand.hbm [shape: f32[2,8,128], index: 1, kind: input, shape index: {}]
  %s2 = inlined_call_operand.hbm [shape: f32[1,8,128], index: 2, kind: output, shape index: {}]
  %s3 = sld [smem:[#allocation0]]
  $region38: #{tpu_custom_call.1} parent=0
    _
  %s5 = ssub.s32 1, %s3
  %s6 = scalar_select 0, %s5, %s3
  $region1: #{tpu_custom_call.1} parent=0
    #allocation2 [shape = 'u8[8192]{0}', space=vmem, size = 0x2000, scoped, tag = 'input window, operand 0, single buffered']
    #allocation3 [shape = 's32[1]{0}', space=sflag, size = 0x4, scoped, tag = 'scoped memory for tpu_custom_call.1']
    #allocation4 [shape = 's32[1]{0}', space=sflag, size = 0x4, scoped, tag = 'scoped memory for tpu_custom_call.1']
    #allocation5 [shape = 'u8[8192]{0}', space=vmem, size = 0x2000, scoped, tag = 'input window, operand 1, single buffered']
    #allocation6 [shape = 's32[1]{0}', space=sflag, size = 0x4, scoped, tag = 'scoped memory for tpu_custom_call.1']
    #allocation7 [shape = 'u8[4096]{0}', space=vmem, size = 0x1000, scoped, tag = 'output window, operand 0, single buffered']
    %7 = vsyncpa [#allocation3], 0
    %8 = vsyncpa [#allocation6], 0
    %9 = vsyncpa [#allocation4], 0
    // Predicated region
    $region2: #{tpu_custom_call.1} parent=1 // pred_check
      _
    $region3: #{tpu_custom_call.1} parent=1 // pred_check_branch
      %11 = sbr.rel (0) target = $region5
    $region4: #{tpu_custom_call.1} parent=1 // pred_region
      %s12 = sadd.s32 0, 0
      %p13 = scmp.lt.s32.totalorder %s12, 0
      %s14 = scalar_select %p13, %s12, 0
      %s15 = smul.u32 2, %s14
      %s17 = ssub.s32 256, 256
      %18 = vsyncadd [#allocation3], %s17
      %s19 = smul.addr %s15, 128
      %s20 = scalar_lea.hbm %s0, %s19
      %s21 = sshll.u32 [#allocation2], 4
      %s22 = int_to_ptr.vmem [resolvable:$true] %s21
      %27 = dma.hbm_to_vmem [thread:$0]  %s20, 256, %s22, [#allocation3], 128, 128, 8
    $region5: #{tpu_custom_call.1} parent=1 // pred_fallthru
      _
    // Predicated region
    $region6: #{tpu_custom_call.1} parent=1 // pred_check
      _
    $region7: #{tpu_custom_call.1} parent=1 // pred_check_branch
      %29 = sbr.rel (0) target = $region9
    $region8: #{tpu_custom_call.1} parent=1 // pred_region
      %s30 = sadd.s32 0, 0
      %p31 = scmp.lt.s32.totalorder %s30, 0
      %s32 = scalar_select %p31, %s30, 0
      %s33 = smul.u32 2, %s32
      %s35 = ssub.s32 256, 256
      %36 = vsyncadd [#allocation6], %s35
      %s37 = smul.addr %s33, 128
      %s38 = scalar_lea.hbm %s1, %s37
      %s39 = sshll.u32 [#allocation5], 4
      %s40 = int_to_ptr.vmem [resolvable:$true] %s39
      %45 = dma.hbm_to_vmem [thread:$0]  %s38, 256, %s40, [#allocation6], 128, 128, 8
    $region9: #{tpu_custom_call.1} parent=1 // pred_fallthru
      _
    // Predicated region
    $region10: #{tpu_custom_call.1} parent=1 // pred_check
      _
    $region11: #{tpu_custom_call.1} parent=1 // pred_check_branch
      %47 = sbr.rel (0) target = $region13
    $region12: #{tpu_custom_call.1} parent=1 // pred_region
      %48 = dma.done [#allocation3], 256
    $region13: #{tpu_custom_call.1} parent=1 // pred_fallthru
      _
    // Predicated region
    $region14: #{tpu_custom_call.1} parent=1 // pred_check
      _
    $region15: #{tpu_custom_call.1} parent=1 // pred_check_branch
      %50 = sbr.rel (0) target = $region17
    $region16: #{tpu_custom_call.1} parent=1 // pred_region
      %51 = dma.done [#allocation6], 256
    $region17: #{tpu_custom_call.1} parent=1 // pred_fallthru
      _
    %s52 = sadd.s32 0, 0
    %p53 = scmp.lt.s32.totalorder %s52, 0
    %s54 = scalar_select %p53, %s52, 0
    %s55 = smul.u32 2, %s54
    %s56 = sadd.s32 0, 0
    %p57 = scmp.lt.s32.totalorder %s56, 0
    %s58 = scalar_select %p57, %s56, 0
    %s59 = smul.u32 2, %s58
    %p60 = scmp.eq.s32.totalorder 0, 0
    // Predicated region
    $region18: #{tpu_custom_call.1} parent=1 // pred_check
      %p61 = pneg %p60
    $region19: #{tpu_custom_call.1} parent=1 // pred_check_branch
      %63 = sbr.rel (%p61) target = $region21
    $region20: #{tpu_custom_call.1} parent=1 // pred_region
      %64 = vst [vmem:[#allocation7] sm:$0xff] 0.0
    $region21: #{tpu_custom_call.1} parent=1 // pred_fallthru
      _
    %s65 = sadd.s32 0, 0
    %s66 = smul.u32 %s65, 2
    %p67 = scmp.lt.s32.totalorder %s65, 0
    // Predicated region
    $region22: #{tpu_custom_call.1} parent=1 // pred_check
      %p68 = pneg %p67
    $region23: #{tpu_custom_call.1} parent=1 // pred_check_branch
      %70 = sbr.rel (%p68) target = $region25
    $region24: #{tpu_custom_call.1} parent=1 // pred_region
      %s71 = smul.u32 0, 8
      %s72 = scalar_lea.vmem [#allocation2], %s71
      %v73 = vld [vmem:[%s72] sm:$0xff]
      %v74 = vld [vmem:[%s72 + $0x8] sm:$0xff]
      %s75 = scalar_lea.vmem [#allocation5], %s71
      %v76 = vld [vmem:[%s75] sm:$0xff]
      %v77 = vld [vmem:[%s75 + $0x8] sm:$0xff]
      %vm78 = vcmp.ne.f32.partialorder %v76, 0.0
      %vm79 = vcmp.ne.f32.partialorder %v77, 0.0
      %v80 = vsub.f32 %v73, %v76
      %v81 = vsub.f32 %v74, %v77
      %v82 = vsel %vm78, %v80, 0.0
      %v83 = vsel %vm79, %v81, 0.0
      %v84 = vand.u32 2147483647, %v82
      %v85 = vand.u32 2147483647, %v83
      %vm86 = vcmp.lt.f32.partialorder %v84, 1.0
      %vm87 = vcmp.lt.f32.partialorder %v85, 1.0
      %v88 = vmul.f32 %v82, 0.5
      %v89 = vmul.f32 %v83, 0.5
      %v90 = vmul.f32 %v88, %v82
      %v91 = vmul.f32 %v89, %v83
      %v92 = vsub.f32 %v84, 0.5
      %v93 = vsub.f32 %v85, 0.5
      %v94 = vsel %vm86, %v90, %v92
      %v95 = vsel %vm87, %v91, %v93
      %v96 = vld [vmem:[#allocation7] sm:$0xff]
      %v97 = vadd.f32 %v94, %v95
      %v98 = vadd.f32 %v96, %v97
      %99 = vst [vmem:[#allocation7] sm:$0xff] %v98
    $region25: #{tpu_custom_call.1} parent=1 // pred_fallthru
      _
    %p100 = scmp.ge.s32.totalorder %s65, 0
    // Predicated region
    $region26: #{tpu_custom_call.1} parent=1 // pred_check
      %p101 = pneg %p100
    $region27: #{tpu_custom_call.1} parent=1 // pred_check_branch
      %103 = sbr.rel (%p101) target = $region29
    $region28: #{tpu_custom_call.1} parent=1 // pred_region
      %s104 = smul.u32 0, 8
      %s105 = scalar_lea.vmem [#allocation2], %s104
      %v106 = vld [vmem:[%s105] sm:$0xff]
      %v107 = vld [vmem:[%s105 + $0x8] sm:$0xff]
      %s108 = scalar_lea.vmem [#allocation5], %s104
      %v109 = vld [vmem:[%s108] sm:$0xff]
      %v110 = vld [vmem:[%s108 + $0x8] sm:$0xff]
      %vm111 = vcmp.ne.f32.partialorder %v109, 0.0
      %vm112 = vcmp.ne.f32.partialorder %v110, 0.0
      %s113 = sadd.s32 %s66, 0
      %v114 = vstv %s113
      %v115 = vadd.s32 %v114, 1
      %vm116 = vcmp.lt.s32.totalorder %v114, 2
      %vm117 = vcmp.lt.s32.totalorder %v115, 2
      %vm118 = vmand %vm111, %vm116
      %vm119 = vmand %vm112, %vm117
      %v120 = vsub.f32 %v106, %v109
      %v121 = vsub.f32 %v107, %v110
      %v122 = vsel %vm118, %v120, 0.0
      %v123 = vsel %vm119, %v121, 0.0
      %v124 = vand.u32 2147483647, %v122
      %v125 = vand.u32 2147483647, %v123
      %vm126 = vcmp.lt.f32.partialorder %v124, 1.0
      %vm127 = vcmp.lt.f32.partialorder %v125, 1.0
      %v128 = vmul.f32 %v122, 0.5
      %v129 = vmul.f32 %v123, 0.5
      %v130 = vmul.f32 %v128, %v122
      %v131 = vmul.f32 %v129, %v123
      %v132 = vsub.f32 %v124, 0.5
      %v133 = vsub.f32 %v125, 0.5
      %v134 = vsel %vm126, %v130, %v132
      %v135 = vsel %vm127, %v131, %v133
      %v136 = vld [vmem:[#allocation7] sm:$0xff]
      %v137 = vadd.f32 %v134, %v135
      %v138 = vadd.f32 %v136, %v137
      %139 = vst [vmem:[#allocation7] sm:$0xff] %v138
    $region29: #{tpu_custom_call.1} parent=1 // pred_fallthru
      _
    // Predicated region
    $region30: #{tpu_custom_call.1} parent=1 // pred_check
      _
    $region31: #{tpu_custom_call.1} parent=1 // pred_check_branch
      %141 = sbr.rel (0) target = $region33
    $region32: #{tpu_custom_call.1} parent=1 // pred_region
      %s143 = ssub.s32 128, 128
      %144 = vsyncadd [#allocation4], %s143
      %s146 = sshll.u32 [#allocation7], 4
      %s147 = int_to_ptr.vmem [resolvable:$true] %s146
      %149 = dma.vmem_to_hbm [thread:$0]  %s147, 128, %s2, [#allocation4]
    $region33: #{tpu_custom_call.1} parent=1 // pred_fallthru
      _
    // Predicated region
    $region34: #{tpu_custom_call.1} parent=1 // pred_check
      _
    $region35: #{tpu_custom_call.1} parent=1 // pred_check_branch
      %151 = sbr.rel (0) target = $region37
    $region36: #{tpu_custom_call.1} parent=1 // pred_region
      %152 = dma.done [#allocation4], 128
    $region37: #{tpu_custom_call.1} parent=1 // pred_fallthru
      _
    %153 = vsyncpa [#allocation3], 1
    %154 = vsyncpa [#allocation6], 1
    %155 = vsyncpa [#allocation4], 1

</llo_original>
